<compile_context>
chip_gen: v5e
topology: v5e:2x2
jax: 0.10.0
libtpu: 0.0.40
codegen_flags: <defaults>
</compile_context>

<pallas_src>
import jax
import jax.numpy as jnp
from jax.experimental import pallas as pl
from jax.experimental.pallas import tpu as pltpu

TARGET_BLOCK_BYTES = 2 * 1024 * 1024   # per-input, per-block VMEM budget


def _round_up(x, m):
    return -(-x // m) * m


def _make_kernel(under, over, bl, blocks_per_chunk, n_lead, needs_mask):
    # under/over/sizes are Python scalars -> literals in the kernel trace,
    # NOT captured jnp constants (this fixes the previous trace error).
    def kernel(pred_ref, target_ref, psum_ref):
        b = pl.program_id(1)           # reduction axis (last grid axis)

        @pl.when(b == 0)
        def _():
            psum_ref[...] = jnp.zeros_like(psum_ref)

        p = pred_ref[...]
        t = target_ref[...]
        if p.dtype != jnp.float32:     # cast in-kernel: HBM traffic stays at input width
            p = p.astype(jnp.float32)
            t = t.astype(jnp.float32)
        err = p - t
        sq = err * err
        # One select + one multiply instead of two multiplies + select.
        loss = sq * jnp.where(err < 0, under, over)

        if needs_mask:
            # Emitted (at trace time) only when the final block is partial:
            # zero out rows past the true leading extent instead of padding.
            g = pl.program_id(0) * blocks_per_chunk + b
            rows = jax.lax.broadcasted_iota(jnp.int32, loss.shape, 0)
            loss = jnp.where(g * bl + rows < n_lead, loss, 0.0)

        # Leading-axis sum = elementwise VPU vreg adds into the resident
        # (1, d1, d2) accumulator block.
        psum_ref[...] += loss.sum(axis=0, keepdims=True)

    return kernel


def asymmetric_loss(pred, target, under_penalty=2.0, over_penalty=1.0,
                    target_block_bytes=TARGET_BLOCK_BYTES):
    assert pred.shape == target.shape, (pred.shape, target.shape)
    n_valid = pred.size
    if n_valid == 0:
        return jnp.float32(float("nan"))   # torch .mean() of an empty tensor is NaN

    # Collapse leading dims only (layout-free: the tiled last two dims are
    # untouched), so no wrapper-side ravel/pad/reshape HBM round-trips.
    if pred.ndim >= 3:
        d1, d2 = pred.shape[-2], pred.shape[-1]
        n_lead = n_valid // (d1 * d2)
    elif pred.ndim == 2:
        (d1, d2), n_lead = pred.shape, 1
    else:
        d1, d2, n_lead = 1, max(n_valid, 1), 1
    p3 = jnp.reshape(pred, (n_lead, d1, d2))
    t3 = jnp.reshape(target, (n_lead, d1, d2))

    # VMEM footprint of one trailing (d1, d2) slice (tile-padded, f32 upper bound).
    slice_bytes = _round_up(d1, 8) * _round_up(d2, 128) * 4
    # TODO(synk): if a single (d1, d2) slice exceeds ~8 MiB an extra tiling level
    # over d1/d2 is needed; not implemented here.
    bl = min(n_lead, max(1, target_block_bytes // slice_bytes))

    nblocks = -(-n_lead // bl)
    # Megacore-friendly split of the block range; degenerate to 1 chunk when small.
    chunks = 2 if (nblocks >= 4 and nblocks % 2 == 0) else 1
    blocks_per_chunk = nblocks // chunks
    needs_mask = (nblocks * bl != n_lead)

    kernel = _make_kernel(float(under_penalty), float(over_penalty),
                          bl, blocks_per_chunk, n_lead, needs_mask)

    in_map = lambda c, b: (c * blocks_per_chunk + b, 0, 0)

    block_bytes = bl * slice_bytes
    vmem_limit = int(min(100 << 20, max(32 << 20, 6 * block_bytes)))

    partials = pl.pallas_call(
        kernel,
        out_shape=jax.ShapeDtypeStruct((chunks, d1, d2), jnp.float32),
        grid_spec=pltpu.PrefetchScalarGridSpec(
            num_scalar_prefetch=0,
            grid=(chunks, blocks_per_chunk),
            in_specs=[
                pl.BlockSpec((bl, d1, d2), in_map),
                pl.BlockSpec((bl, d1, d2), in_map),
            ],
            # Constant block index along the reduction axis -> resident accumulator.
            out_specs=pl.BlockSpec((1, d1, d2), lambda c, b: (c, 0, 0)),
        ),
        compiler_params=pltpu.CompilerParams(
            dimension_semantics=("parallel", "arbitrary"),
            vmem_limit_bytes=vmem_limit,
        ),
        cost_estimate=pl.CostEstimate(
            flops=5 * n_valid,
            transcendentals=0,
            bytes_accessed=2 * n_valid * pred.dtype.itemsize + 4 * chunks * d1 * d2,
        ),
    )(p3, t3)

    # Single tiny cross-lane reduce + one multiply, off the streaming loop.
    return jnp.sum(partials) * jnp.float32(1.0 / n_valid)


def _ref_loss(pred, target, under=2.0, over=1.0):
    p = pred.astype(jnp.float32)
    t = target.astype(jnp.float32)
    e = p - t
    return jnp.mean(jnp.where(e < 0, under * e * e, over * e * e))


if __name__ == "__main__":
    key = jax.random.PRNGKey(0)
    k1, k2, k3, k4, k5, k6 = jax.random.split(key, 6)

    # 1) Base NCHW case.
    pred = jax.random.normal(k1, (2, 4, 16, 16), dtype=jnp.float32)
    target = jax.random.normal(k2, (2, 4, 16, 16), dtype=jnp.float32)
    loss = asymmetric_loss(pred, target, under_penalty=2.0, over_penalty=1.0)
    jax.block_until_ready(loss)
    assert jnp.allclose(loss, _ref_loss(pred, target), rtol=1e-5, atol=1e-6)

    # 2) Non (8,128)-aligned trailing dims.
    pred2 = jax.random.normal(k3, (3, 5, 7, 11), dtype=jnp.float32)
    target2 = jax.random.normal(k4, (3, 5, 7, 11), dtype=jnp.float32)
    loss2 = asymmetric_loss(pred2, target2, under_penalty=2.0, over_penalty=1.0)
    jax.block_until_ready(loss2)
    assert jnp.allclose(loss2, _ref_loss(pred2, target2), rtol=1e-5, atol=1e-6)

    # 3) Multi-block grid with chunk split and a masked partial tail block
    #    (small block budget forces several grid steps).
    pred3 = jax.random.normal(k5, (2, 15, 16, 16), dtype=jnp.float32)
    target3 = jax.random.normal(k6, (2, 15, 16, 16), dtype=jnp.float32)
    loss3 = asymmetric_loss(pred3, target3, under_penalty=2.0, over_penalty=1.0,
                            target_block_bytes=32 * 1024)
    jax.block_until_ready(loss3)
    assert jnp.allclose(loss3, _ref_loss(pred3, target3), rtol=1e-5, atol=1e-6)

    # 4) bf16 inputs (in-kernel upcast path; reference computed in f32).
    pred4 = pred.astype(jnp.bfloat16)
    target4 = target.astype(jnp.bfloat16)
    loss4 = asymmetric_loss(pred4, target4, under_penalty=2.0, over_penalty=1.0)
    jax.block_until_ready(loss4)
    assert jnp.allclose(loss4, _ref_loss(pred4, target4), rtol=1e-5, atol=1e-5)

    print("KERNEL_OK")
</pallas_src>

<mosaic_0001>
module attributes {stable_mosaic.version = 11 : i64} {
  func.func @kernel(%arg0: i32, %arg1: i32, %arg2: memref<8x16x16xf32, #tpu.memory_space<vmem>>, %arg3: memref<8x16x16xf32, #tpu.memory_space<vmem>>, %arg4: memref<1x16x16xf32, #tpu.memory_space<vmem>>) attributes {dimension_semantics = [#tpu.dimension_semantics<parallel>, #tpu.dimension_semantics<arbitrary>], iteration_bounds = array<i64: 1, 1>, scalar_prefetch = 0 : i64, scratch_operands = 0 : i64, tpu.core_type = #tpu.core_type<tc>, window_params = [{transform_indices = @transform_0, window_bounds = array<i64: 8, 16, 16>}, {transform_indices = @transform_1, window_bounds = array<i64: 8, 16, 16>}, {transform_indices = @transform_2, window_bounds = array<i64: 1, 16, 16>}]} {
    %c0_i32 = arith.constant 0 : i32
    %0 = arith.cmpi eq, %arg1, %c0_i32 : i32
    %1 = arith.extui %0 : i1 to i32
    %c0_i32_0 = arith.constant 0 : i32
    %2 = arith.cmpi ne, %1, %c0_i32_0 : i32
    scf.if %2 {
      %cst_15 = arith.constant 0.000000e+00 : f32
      %18 = vector.broadcast %cst_15 : f32 to vector<1x16x16xf32>
      %c0_16 = arith.constant 0 : index
      %c0_17 = arith.constant 0 : index
      %c0_18 = arith.constant 0 : index
      %19 = vector.load %arg4[%c0_16, %c0_17, %c0_18] : memref<1x16x16xf32, #tpu.memory_space<vmem>>, vector<1x16x16xf32>
      tpu.vector_store %arg4[%c0_16, %c0_17, %c0_18], %18 {strides = array<i32>} : memref<1x16x16xf32, #tpu.memory_space<vmem>>, vector<1x16x16xf32>,
    } else {
    }
    %c0 = arith.constant 0 : index
    %c0_1 = arith.constant 0 : index
    %c0_2 = arith.constant 0 : index
    %3 = vector.load %arg2[%c0, %c0_1, %c0_2] : memref<8x16x16xf32, #tpu.memory_space<vmem>>, vector<8x16x16xf32>
    %c0_3 = arith.constant 0 : index
    %c0_4 = arith.constant 0 : index
    %c0_5 = arith.constant 0 : index
    %4 = vector.load %arg3[%c0_3, %c0_4, %c0_5] : memref<8x16x16xf32, #tpu.memory_space<vmem>>, vector<8x16x16xf32>
    %5 = arith.subf %3, %4 : vector<8x16x16xf32>
    %6 = arith.mulf %5, %5 : vector<8x16x16xf32>
    %cst = arith.constant 0.000000e+00 : f32
    %7 = vector.broadcast %cst : f32 to vector<8x16x16xf32>
    %8 = arith.cmpf olt, %5, %7 : vector<8x16x16xf32>
    %cst_6 = arith.constant 2.000000e+00 : f32
    %cst_7 = arith.constant 1.000000e+00 : f32
    %9 = vector.broadcast %cst_6 : f32 to vector<8x16x16xf32>
    %10 = vector.broadcast %cst_7 : f32 to vector<8x16x16xf32>
    %11 = arith.select %8, %9, %10 : vector<8x16x16xi1>, vector<8x16x16xf32>
    %12 = arith.mulf %6, %11 : vector<8x16x16xf32>
    %c0_8 = arith.constant 0 : index
    %c0_9 = arith.constant 0 : index
    %c0_10 = arith.constant 0 : index
    %13 = vector.load %arg4[%c0_8, %c0_9, %c0_10] : memref<1x16x16xf32, #tpu.memory_space<vmem>>, vector<1x16x16xf32>
    %cst_11 = arith.constant dense<0.000000e+00> : vector<16x16xf32>
    %14 = vector.multi_reduction <add>, %12, %cst_11 [0] : vector<8x16x16xf32> to vector<16x16xf32>
    %15 = vector.shape_cast %14 : vector<16x16xf32> to vector<1x16x16xf32>
    %16 = arith.addf %13, %15 : vector<1x16x16xf32>
    %c0_12 = arith.constant 0 : index
    %c0_13 = arith.constant 0 : index
    %c0_14 = arith.constant 0 : index
    %17 = vector.load %arg4[%c0_12, %c0_13, %c0_14] : memref<1x16x16xf32, #tpu.memory_space<vmem>>, vector<1x16x16xf32>
    tpu.vector_store %arg4[%c0_12, %c0_13, %c0_14], %16 {strides = array<i32>} : memref<1x16x16xf32, #tpu.memory_space<vmem>>, vector<1x16x16xf32>,
    return
  }
  func.func @transform_0(%arg0: i32, %arg1: i32) -> (i32, i32, i32) {
    %c1_i32 = arith.constant 1 : i32
    %0 = arith.muli %arg0, %c1_i32 : i32
    %1 = arith.addi %0, %arg1 : i32
    %c0_i32 = arith.constant 0 : i32
    %c0_i32_0 = arith.constant 0 : i32
    %c0_i32_1 = arith.constant 0 : i32
    return %1, %c0_i32, %c0_i32_0 : i32, i32, i32
  }
  func.func @transform_1(%arg0: i32, %arg1: i32) -> (i32, i32, i32) {
    %c1_i32 = arith.constant 1 : i32
    %0 = arith.muli %arg0, %c1_i32 : i32
    %1 = arith.addi %0, %arg1 : i32
    %c0_i32 = arith.constant 0 : i32
    %c0_i32_0 = arith.constant 0 : i32
    %c0_i32_1 = arith.constant 0 : i32
    return %1, %c0_i32, %c0_i32_0 : i32, i32, i32
  }
  func.func @transform_2(%arg0: i32, %arg1: i32) -> (i32, i32, i32) {
    %c0_i32 = arith.constant 0 : i32
    %c0_i32_0 = arith.constant 0 : i32
    %c0_i32_1 = arith.constant 0 : i32
    return %arg0, %c0_i32, %c0_i32_0 : i32, i32, i32
  }
}

</mosaic_0001>

<llo_original>
// kernel: tpu_custom_call.1
$region0: #{tpu_custom_call.1}
  #allocation0 [shape = 'u32[]', space=smem, size = 0x4, offset = 0x4, fixed_abs, tag = 'smem constant byte address 0x4 - core index']
  #allocation1 [shape = 'u32[72,128]{1,0:T(1,128)}', space=vmem, size = 0x9000, scoped, tag = 'internal scratch']
  %s0 = inlined_call_operand.hbm [shape: f32[8,16,16], index: 0, kind: input, shape index: {}]
  %s1 = inlined_call_operand.hbm [shape: f32[8,16,16], index: 1, kind: input, shape index: {}]
  %s2 = inlined_call_operand.hbm [shape: f32[1,16,16], index: 2, kind: output, shape index: {}]
  %s3 = sld [smem:[#allocation0]]
  $region30: #{tpu_custom_call.1} parent=0
    _
  %s5 = ssub.s32 1, %s3
  %s6 = scalar_select 0, %s5, %s3
  $region1: #{tpu_custom_call.1} parent=0
    #allocation2 [shape = 'u8[65536]{0}', space=vmem, size = 0x10000, scoped, tag = 'input window, operand 0, single buffered']
    #allocation3 [shape = 's32[1]{0}', space=sflag, size = 0x4, scoped, tag = 'scoped memory for tpu_custom_call.1']
    #allocation4 [shape = 's32[1]{0}', space=sflag, size = 0x4, scoped, tag = 'scoped memory for tpu_custom_call.1']
    #allocation5 [shape = 'u8[65536]{0}', space=vmem, size = 0x10000, scoped, tag = 'input window, operand 1, single buffered']
    #allocation6 [shape = 's32[1]{0}', space=sflag, size = 0x4, scoped, tag = 'scoped memory for tpu_custom_call.1']
    #allocation7 [shape = 'u8[8192]{0}', space=vmem, size = 0x2000, scoped, tag = 'output window, operand 0, single buffered']
    %7 = vsyncpa [#allocation3], 0
    %8 = vsyncpa [#allocation6], 0
    %9 = vsyncpa [#allocation4], 0
    // Predicated region
    $region2: #{tpu_custom_call.1} parent=1 // pred_check
      _
    $region3: #{tpu_custom_call.1} parent=1 // pred_check_branch
      %11 = sbr.rel (0) target = $region5
    $region4: #{tpu_custom_call.1} parent=1 // pred_region
      %s12 = sadd.s32 0, 0
      %s13 = smul.u32 8, %s12
      %15 = vsyncadd [#allocation3], 0
      %s16 = smul.addr %s13, 2
      %s17 = smul.addr %s16, 8
      %s18 = scalar_lea.hbm %s0, %s17
      %s19 = sshll.u32 %s18, 4
      %s20 = int_to_ptr.hbm [resolvable:$true] %s19
      %s21 = sshll.u32 [#allocation2], 4
      %s22 = int_to_ptr.vmem [resolvable:$true] %s21
      %27 = dma.hbm_to_vmem [thread:$0]  %s20, 2048, %s22, [#allocation3], 128, 128, 8
    $region5: #{tpu_custom_call.1} parent=1 // pred_fallthru
      _
    // Predicated region
    $region6: #{tpu_custom_call.1} parent=1 // pred_check
      _
    $region7: #{tpu_custom_call.1} parent=1 // pred_check_branch
      %29 = sbr.rel (0) target = $region9
    $region8: #{tpu_custom_call.1} parent=1 // pred_region
      %s30 = sadd.s32 0, 0
      %s31 = smul.u32 8, %s30
      %33 = vsyncadd [#allocation6], 0
      %s34 = smul.addr %s31, 2
      %s35 = smul.addr %s34, 8
      %s36 = scalar_lea.hbm %s1, %s35
      %s37 = sshll.u32 %s36, 4
      %s38 = int_to_ptr.hbm [resolvable:$true] %s37
      %s39 = sshll.u32 [#allocation5], 4
      %s40 = int_to_ptr.vmem [resolvable:$true] %s39
      %45 = dma.hbm_to_vmem [thread:$0]  %s38, 2048, %s40, [#allocation6], 128, 128, 8
    $region9: #{tpu_custom_call.1} parent=1 // pred_fallthru
      _
    // Predicated region
    $region10: #{tpu_custom_call.1} parent=1 // pred_check
      _
    $region11: #{tpu_custom_call.1} parent=1 // pred_check_branch
      %47 = sbr.rel (0) target = $region13
    $region12: #{tpu_custom_call.1} parent=1 // pred_region
      %49 = dma.done [#allocation3], 2048
    $region13: #{tpu_custom_call.1} parent=1 // pred_fallthru
      _
    // Predicated region
    $region14: #{tpu_custom_call.1} parent=1 // pred_check
      _
    $region15: #{tpu_custom_call.1} parent=1 // pred_check_branch
      %51 = sbr.rel (0) target = $region17
    $region16: #{tpu_custom_call.1} parent=1 // pred_region
      %53 = dma.done [#allocation6], 2048
    $region17: #{tpu_custom_call.1} parent=1 // pred_fallthru
      _
    %s54 = sadd.s32 0, 0
    %s55 = smul.u32 8, %s54
    %s56 = sadd.s32 0, 0
    %s57 = smul.u32 8, %s56
    %p58 = scmp.eq.s32.totalorder 0, 0
    // Predicated region
    $region18: #{tpu_custom_call.1} parent=1 // pred_check
      %p59 = pneg %p58
    $region19: #{tpu_custom_call.1} parent=1 // pred_check_branch
      %61 = sbr.rel (%p59) target = $region21
    $region20: #{tpu_custom_call.1} parent=1 // pred_region
      %vm62 = vcmask 130048
      %63 = vst.msk [vmem:[#allocation7] sm:$0xff] %vm62, 0.0
      %64 = vst.msk [vmem:[#allocation7 + $0x8] sm:$0xff] %vm62, 0.0
    $region21: #{tpu_custom_call.1} parent=1 // pred_fallthru
      _
    %v65 = vld [vmem:[#allocation2] sm:$0xff]
    %v66 = vld [vmem:[#allocation2 + $0x8] sm:$0xff]
    %v67 = vld [vmem:[#allocation2 + $0x10] sm:$0xff]
    %v68 = vld [vmem:[#allocation2 + $0x18] sm:$0xff]
    %v69 = vld [vmem:[#allocation2 + $0x20] sm:$0xff]
    %v70 = vld [vmem:[#allocation2 + $0x28] sm:$0xff]
    %v71 = vld [vmem:[#allocation2 + $0x30] sm:$0xff]
    %v72 = vld [vmem:[#allocation2 + $0x38] sm:$0xff]
    %v73 = vld [vmem:[#allocation2 + $0x40] sm:$0xff]
    %v74 = vld [vmem:[#allocation2 + $0x48] sm:$0xff]
    %v75 = vld [vmem:[#allocation2 + $0x50] sm:$0xff]
    %v76 = vld [vmem:[#allocation2 + $0x58] sm:$0xff]
    %v77 = vld [vmem:[#allocation2 + $0x60] sm:$0xff]
    %v78 = vld [vmem:[#allocation2 + $0x68] sm:$0xff]
    %v79 = vld [vmem:[#allocation2 + $0x70] sm:$0xff]
    %v80 = vld [vmem:[#allocation2 + $0x78] sm:$0xff]
    %v81 = vld [vmem:[#allocation5] sm:$0xff]
    %v82 = vld [vmem:[#allocation5 + $0x8] sm:$0xff]
    %v83 = vld [vmem:[#allocation5 + $0x10] sm:$0xff]
    %v84 = vld [vmem:[#allocation5 + $0x18] sm:$0xff]
    %v85 = vld [vmem:[#allocation5 + $0x20] sm:$0xff]
    %v86 = vld [vmem:[#allocation5 + $0x28] sm:$0xff]
    %v87 = vld [vmem:[#allocation5 + $0x30] sm:$0xff]
    %v88 = vld [vmem:[#allocation5 + $0x38] sm:$0xff]
    %v89 = vld [vmem:[#allocation5 + $0x40] sm:$0xff]
    %v90 = vld [vmem:[#allocation5 + $0x48] sm:$0xff]
    %v91 = vld [vmem:[#allocation5 + $0x50] sm:$0xff]
    %v92 = vld [vmem:[#allocation5 + $0x58] sm:$0xff]
    %v93 = vld [vmem:[#allocation5 + $0x60] sm:$0xff]
    %v94 = vld [vmem:[#allocation5 + $0x68] sm:$0xff]
    %v95 = vld [vmem:[#allocation5 + $0x70] sm:$0xff]
    %v96 = vld [vmem:[#allocation5 + $0x78] sm:$0xff]
    %v97 = vsub.f32 %v65, %v81
    %v98 = vsub.f32 %v66, %v82
    %v99 = vsub.f32 %v67, %v83
    %v100 = vsub.f32 %v68, %v84
    %v101 = vsub.f32 %v69, %v85
    %v102 = vsub.f32 %v70, %v86
    %v103 = vsub.f32 %v71, %v87
    %v104 = vsub.f32 %v72, %v88
    %v105 = vsub.f32 %v73, %v89
    %v106 = vsub.f32 %v74, %v90
    %v107 = vsub.f32 %v75, %v91
    %v108 = vsub.f32 %v76, %v92
    %v109 = vsub.f32 %v77, %v93
    %v110 = vsub.f32 %v78, %v94
    %v111 = vsub.f32 %v79, %v95
    %v112 = vsub.f32 %v80, %v96
    %v113 = vmul.f32 %v97, %v97
    %v114 = vmul.f32 %v98, %v98
    %v115 = vmul.f32 %v99, %v99
    %v116 = vmul.f32 %v100, %v100
    %v117 = vmul.f32 %v101, %v101
    %v118 = vmul.f32 %v102, %v102
    %v119 = vmul.f32 %v103, %v103
    %v120 = vmul.f32 %v104, %v104
    %v121 = vmul.f32 %v105, %v105
    %v122 = vmul.f32 %v106, %v106
    %v123 = vmul.f32 %v107, %v107
    %v124 = vmul.f32 %v108, %v108
    %v125 = vmul.f32 %v109, %v109
    %v126 = vmul.f32 %v110, %v110
    %v127 = vmul.f32 %v111, %v111
    %v128 = vmul.f32 %v112, %v112
    %vm129 = vcmp.lt.f32.partialorder %v97, 0.0
    %vm130 = vcmp.lt.f32.partialorder %v98, 0.0
    %vm131 = vcmp.lt.f32.partialorder %v99, 0.0
    %vm132 = vcmp.lt.f32.partialorder %v100, 0.0
    %vm133 = vcmp.lt.f32.partialorder %v101, 0.0
    %vm134 = vcmp.lt.f32.partialorder %v102, 0.0
    %vm135 = vcmp.lt.f32.partialorder %v103, 0.0
    %vm136 = vcmp.lt.f32.partialorder %v104, 0.0
    %vm137 = vcmp.lt.f32.partialorder %v105, 0.0
    %vm138 = vcmp.lt.f32.partialorder %v106, 0.0
    %vm139 = vcmp.lt.f32.partialorder %v107, 0.0
    %vm140 = vcmp.lt.f32.partialorder %v108, 0.0
    %vm141 = vcmp.lt.f32.partialorder %v109, 0.0
    %vm142 = vcmp.lt.f32.partialorder %v110, 0.0
    %vm143 = vcmp.lt.f32.partialorder %v111, 0.0
    %vm144 = vcmp.lt.f32.partialorder %v112, 0.0
    %v145 = vsel %vm129, 2.0, 1.0
    %v146 = vsel %vm130, 2.0, 1.0
    %v147 = vsel %vm131, 2.0, 1.0
    %v148 = vsel %vm132, 2.0, 1.0
    %v149 = vsel %vm133, 2.0, 1.0
    %v150 = vsel %vm134, 2.0, 1.0
    %v151 = vsel %vm135, 2.0, 1.0
    %v152 = vsel %vm136, 2.0, 1.0
    %v153 = vsel %vm137, 2.0, 1.0
    %v154 = vsel %vm138, 2.0, 1.0
    %v155 = vsel %vm139, 2.0, 1.0
    %v156 = vsel %vm140, 2.0, 1.0
    %v157 = vsel %vm141, 2.0, 1.0
    %v158 = vsel %vm142, 2.0, 1.0
    %v159 = vsel %vm143, 2.0, 1.0
    %v160 = vsel %vm144, 2.0, 1.0
    %v161 = vmul.f32 %v113, %v145
    %v162 = vmul.f32 %v114, %v146
    %v163 = vmul.f32 %v115, %v147
    %v164 = vmul.f32 %v116, %v148
    %v165 = vmul.f32 %v117, %v149
    %v166 = vmul.f32 %v118, %v150
    %v167 = vmul.f32 %v119, %v151
    %v168 = vmul.f32 %v120, %v152
    %v169 = vmul.f32 %v121, %v153
    %v170 = vmul.f32 %v122, %v154
    %v171 = vmul.f32 %v123, %v155
    %v172 = vmul.f32 %v124, %v156
    %v173 = vmul.f32 %v125, %v157
    %v174 = vmul.f32 %v126, %v158
    %v175 = vmul.f32 %v127, %v159
    %v176 = vmul.f32 %v128, %v160
    %v177 = vld [vmem:[#allocation7] sm:$0xff]
    %v178 = vld [vmem:[#allocation7 + $0x8] sm:$0xff]
    %vm179 = vcmask 130048
    %v180 = vsel %vm179, %v161, 0.0
    %v181 = vsel %vm179, %v163, 0.0
    %v182 = vadd.f32 %v180, %v181
    %v183 = vsel %vm179, %v165, 0.0
    %v184 = vadd.f32 %v182, %v183
    %v185 = vsel %vm179, %v167, 0.0
    %v186 = vadd.f32 %v184, %v185
    %v187 = vsel %vm179, %v169, 0.0
    %v188 = vadd.f32 %v186, %v187
    %v189 = vsel %vm179, %v171, 0.0
    %v190 = vadd.f32 %v188, %v189
    %v191 = vsel %vm179, %v173, 0.0
    %v192 = vadd.f32 %v190, %v191
    %v193 = vsel %vm179, %v175, 0.0
    %v194 = vadd.f32 %v192, %v193
    %v195 = vsel %vm179, %v162, 0.0
    %v196 = vsel %vm179, %v164, 0.0
    %v197 = vadd.f32 %v195, %v196
    %v198 = vsel %vm179, %v166, 0.0
    %v199 = vadd.f32 %v197, %v198
    %v200 = vsel %vm179, %v168, 0.0
    %v201 = vadd.f32 %v199, %v200
    %v202 = vsel %vm179, %v170, 0.0
    %v203 = vadd.f32 %v201, %v202
    %v204 = vsel %vm179, %v172, 0.0
    %v205 = vadd.f32 %v203, %v204
    %v206 = vsel %vm179, %v174, 0.0
    %v207 = vadd.f32 %v205, %v206
    %v208 = vsel %vm179, %v176, 0.0
    %v209 = vadd.f32 %v207, %v208
    %v210 = vadd.f32 %v177, %v194
    %v211 = vadd.f32 %v178, %v209
    %212 = vst.msk [vmem:[#allocation7] sm:$0xff] %vm179, %v210
    %213 = vst.msk [vmem:[#allocation7 + $0x8] sm:$0xff] %vm179, %v211
    // Predicated region
    $region22: #{tpu_custom_call.1} parent=1 // pred_check
      _
    $region23: #{tpu_custom_call.1} parent=1 // pred_check_branch
      %215 = sbr.rel (0) target = $region25
    $region24: #{tpu_custom_call.1} parent=1 // pred_region
      %217 = vsyncadd [#allocation4], 0
      %s218 = sshll.u32 [#allocation7], 4
      %s219 = int_to_ptr.vmem [resolvable:$true] %s218
      %s220 = sshll.u32 %s2, 4
      %s221 = int_to_ptr.hbm [resolvable:$true] %s220
      %226 = dma.vmem_to_hbm [thread:$0]  %s219, 256, %s221, [#allocation4], 128, 128, 8
    $region25: #{tpu_custom_call.1} parent=1 // pred_fallthru
      _
    // Predicated region
    $region26: #{tpu_custom_call.1} parent=1 // pred_check
      _
    $region27: #{tpu_custom_call.1} parent=1 // pred_check_branch
      %228 = sbr.rel (0) target = $region29
    $region28: #{tpu_custom_call.1} parent=1 // pred_region
      %230 = dma.done [#allocation4], 256
    $region29: #{tpu_custom_call.1} parent=1 // pred_fallthru
      _
    %231 = vsyncpa [#allocation3], 1
    %232 = vsyncpa [#allocation6], 1
    %233 = vsyncpa [#allocation4], 1

</llo_original>
